<compile_context>
chip_gen: v7x
topology: tpu7x:2x2x1
jax: 0.10.0
libtpu: 0.0.40
codegen_flags: <defaults>
</compile_context>

<pallas_src>
import functools

import jax
import jax.numpy as jnp
import numpy as np
from jax import lax
from jax.experimental import pallas as pl
from jax.experimental.pallas import tpu as pltpu

_LANE = 128
_SUBLANE = 8
_VMEM_BUDGET_BYTES = 12 * 1024 * 1024   # conservative per-step working-set target
_VMEM_LIMIT_BYTES = 32 * 1024 * 1024    # explicit scoped-VMEM limit, safe on v5e/v6e/v7x
_MAX_ROW_TILE = 1024                    # multiple of 8/16/32


def _round_up(x: int, mult: int) -> int:
    return ((x + mult - 1) // mult) * mult


@functools.lru_cache(maxsize=None)
def _adaptive_pool_matrix_np(n: int, out_size: int, padded_rows: int, padded_cols: int):
    """(padded_rows, padded_cols) f32 averaging matrix matching nn.AdaptiveAvgPool1d.

    Rows >= n and columns >= out_size are zero padding (lane-dense / K-tile aligned).
    """
    w = np.zeros((padded_rows, padded_cols), dtype=np.float32)
    for i in range(out_size):
        start = (i * n) // out_size                 # floor(i*N/M)
        end = -((-(i + 1) * n) // out_size)         # ceil((i+1)*N/M)
        w[start:end, i] = 1.0 / float(end - start)
    return w


def _make_pool_kernel(n: int, tk: int, out_w: int, needs_cast: bool, needs_mask: bool):
    """K-tiled matmul kernel: x (tm, tk) @ w (tk, m_pad) accumulated in f32 scratch."""

    def kernel(x_ref, w_ref, o_ref, acc_ref):
        k = pl.program_id(1)

        @pl.when(k == 0)
        def _init():
            acc_ref[...] = jnp.zeros_like(acc_ref)

        x = x_ref[...]
        if needs_cast:
            x = x.astype(jnp.float32)          # f32 opmath; HBM traffic stays native dtype
        if needs_mask:
            # Last K block may read past N: zero those columns (w rows there are zero too,
            # but garbage could be NaN so mask explicitly -> exact result).
            col = lax.broadcasted_iota(jnp.int32, x_ref.shape, 1)
            x = jnp.where(k * tk + col < n, x, jnp.zeros_like(x))

        acc_ref[...] += jnp.dot(x, w_ref[...], preferred_element_type=jnp.float32)

        @pl.when(k == pl.num_programs(1) - 1)
        def _store():
            o_ref[...] = acc_ref[:, :out_w].astype(o_ref.dtype)

    return kernel


class AdaptivePoolingResolver:
    """JAX/Pallas equivalent of the PyTorch AdaptivePoolingResolver."""

    def __init__(self, embed_dim: int, output_size: int = 1, **kwargs):
        self.embed_dim = embed_dim
        self.output_size = output_size
        # nn.AdaptiveAvgPool1d has no learnable parameters; nothing to init.
        # TODO(synk): unused-kwargs debug logging / resolver registry from the PyTorch
        # module has no Pallas equivalent and is omitted.

    def __call__(self, lower_level: jnp.ndarray, higher_level: jnp.ndarray) -> jnp.ndarray:
        b, c, n = lower_level.shape
        m = self.output_size
        dtype = lower_level.dtype
        itemsize = jnp.dtype(dtype).itemsize
        rows = b * c

        # Output lane width: lane-dense (padded to 128) only if padding is cheap;
        # otherwise store the true (narrow) width and accept masked stores.
        m_pad = _round_up(max(m, 1), _LANE)
        narrow = m_pad >= 2 * m
        out_w = m if narrow else m_pad

        # Sublane packing of the input dtype: 8 (f32) / 16 (bf16) / 32 (int8/fp8).
        pack = max(_SUBLANE, (_SUBLANE * 4) // max(itemsize, 1))
        rows_rounded = _round_up(rows, pack)

        # ---- row tile ----
        tm = min(_MAX_ROW_TILE, rows_rounded)
        # Keep >= ~4 row-grid steps so v7x's two TensorCores both get work (cheap elsewhere).
        tm = min(tm, max(pack, _round_up(pl.cdiv(rows, 4), pack)))
        # Keep the f32 accumulator within half the working-set budget.
        tm_by_acc = max(pack, ((_VMEM_BUDGET_BYTES // 2) // (m_pad * 4)) // pack * pack)
        tm = min(tm, tm_by_acc)

        # ---- K (N-axis) tile, budget-aware ----
        # Budget terms: x double-buffered (+ f32 staging for sub-32-bit dtypes),
        # w double-buffered (f32), out double-buffered, f32 accumulator scratch.
        acc_bytes = tm * m_pad * 4
        out_bytes = 2 * tm * out_w * itemsize
        per_tk = tm * (2 * itemsize + (4 if itemsize < 4 else 0)) + 2 * m_pad * 4
        avail = max(per_tk, _VMEM_BUDGET_BYTES - acc_bytes - out_bytes)
        tk_fit = avail // per_tk
        if n <= tk_fit:
            tk = n                                  # single K block (full-dim block is legal)
        else:
            tk = max(_LANE, (tk_fit // _LANE) * _LANE)

        nk = pl.cdiv(n, tk)
        needs_mask = (n % tk) != 0
        w_rows = nk * tk                            # zero rows beyond n (host side, free)
        w = jnp.asarray(_adaptive_pool_matrix_np(n, m, w_rows, m_pad))   # f32 opmath
        needs_cast = jnp.dtype(dtype) != jnp.dtype(jnp.float32)

        x2d = lower_level.reshape(rows, n)          # native dtype -> minimal HBM read traffic

        grid = (pl.cdiv(rows, tm), nk)              # no row padding: partial blocks masked
        kernel = _make_pool_kernel(n, tk, out_w, needs_cast, needs_mask)

        out2d = pl.pallas_call(
            kernel,
            out_shape=jax.ShapeDtypeStruct((rows, out_w), dtype),
            grid_spec=pltpu.PrefetchScalarGridSpec(
                num_scalar_prefetch=0,
                grid=grid,
                in_specs=[
                    pl.BlockSpec((tm, tk), lambda i, k: (i, k)),
                    pl.BlockSpec((tk, m_pad), lambda i, k: (k, 0)),
                ],
                out_specs=pl.BlockSpec((tm, out_w), lambda i, k: (i, 0)),
                scratch_shapes=[pltpu.VMEM((tm, m_pad), jnp.float32)],
            ),
            compiler_params=pltpu.CompilerParams(
                dimension_semantics=("parallel", "arbitrary"),
                vmem_limit_bytes=_VMEM_LIMIT_BYTES,
            ),
            cost_estimate=pl.CostEstimate(
                flops=2 * rows * n * m_pad,
                bytes_accessed=(rows * n * itemsize
                                + w_rows * m_pad * 4
                                + rows * out_w * itemsize),
                transcendentals=0,
            ),
        )(x2d, w)

        if out2d.shape[1] != m:                     # lane-dense path only
            out2d = out2d[:, :m]
        return out2d.reshape(b, c, m)


def _reference_adaptive_avg_pool1d(x: jnp.ndarray, out_size: int) -> jnp.ndarray:
    """Pure-JAX reference matching PyTorch AdaptiveAvgPool1d."""
    b, c, n = x.shape
    outs = []
    for i in range(out_size):
        start = (i * n) // out_size
        end = -((-(i + 1) * n) // out_size)
        outs.append(jnp.mean(x[:, :, start:end], axis=-1))
    return jnp.stack(outs, axis=-1)


if __name__ == "__main__":
    key = jax.random.PRNGKey(0)
    k1, k2, k3 = jax.random.split(key, 3)

    B, C_in, N = 2, 4, 16       # lower_level: (B, C_in, N)
    C_out, M_high = 8, 8        # higher_level: (B, C_out, M) -- unused by compute
    output_size = 5             # uneven/overlapping adaptive windows (N=16, M=5)

    lower_level = jax.random.normal(k1, (B, C_in, N), dtype=jnp.float32)
    higher_level = jax.random.normal(k2, (B, C_out, M_high), dtype=jnp.float32)

    resolver = AdaptivePoolingResolver(embed_dim=C_in, output_size=output_size)
    out = jax.block_until_ready(resolver(lower_level, higher_level))
    ref = _reference_adaptive_avg_pool1d(lower_level, output_size)
    assert out.shape == (B, C_in, output_size), out.shape
    assert out.dtype == lower_level.dtype, out.dtype
    np.testing.assert_allclose(np.asarray(out), np.asarray(ref), rtol=1e-5, atol=1e-5)

    # Default output_size=1 path (narrow single-lane output via the same matmul kernel).
    resolver1 = AdaptivePoolingResolver(embed_dim=C_in, output_size=1)
    out1 = jax.block_until_ready(resolver1(lower_level, higher_level))
    ref1 = _reference_adaptive_avg_pool1d(lower_level, 1)
    np.testing.assert_allclose(np.asarray(out1), np.asarray(ref1), rtol=1e-5, atol=1e-5)

    # Large-N path: forces K-tiling (nk > 1) with a partial, masked last K block.
    N_big = 16384
    lower_big = jax.random.normal(k3, (B, C_in, N_big), dtype=jnp.float32)
    out_big = jax.block_until_ready(resolver(lower_big, higher_level))
    ref_big = _reference_adaptive_avg_pool1d(lower_big, output_size)
    np.testing.assert_allclose(np.asarray(out_big), np.asarray(ref_big), rtol=1e-4, atol=1e-4)

    print("KERNEL_OK")
</pallas_src>

<mosaic_0001>
module attributes {stable_mosaic.version = 11 : i64} {
  func.func @kernel(%arg0: i32, %arg1: i32, %arg2: memref<8x16xf32, #tpu.memory_space<vmem>>, %arg3: memref<16x128xf32, #tpu.memory_space<vmem>>, %arg4: memref<8x5xf32, #tpu.memory_space<vmem>>, %arg5: memref<8x128xf32, #tpu.memory_space<vmem>>) attributes {dimension_semantics = [#tpu.dimension_semantics<parallel>, #tpu.dimension_semantics<arbitrary>], iteration_bounds = array<i64: 1, 1>, scalar_prefetch = 0 : i64, scratch_operands = 1 : i64, tpu.core_type = #tpu.core_type<tc>, window_params = [{transform_indices = @transform_0, window_bounds = array<i64: 8, 16>}, {transform_indices = @transform_1, window_bounds = array<i64: 16, 128>}, {transform_indices = @transform_2, window_bounds = array<i64: 8, 5>}]} {
    %c0_i32 = arith.constant 0 : i32
    %0 = arith.cmpi eq, %arg1, %c0_i32 : i32
    %1 = arith.extui %0 : i1 to i32
    %c0_i32_0 = arith.constant 0 : i32
    %2 = arith.cmpi ne, %1, %c0_i32_0 : i32
    scf.if %2 {
      %cst_10 = arith.constant 0.000000e+00 : f32
      %12 = vector.broadcast %cst_10 : f32 to vector<8x128xf32>
      %c0_11 = arith.constant 0 : index
      %c0_12 = arith.constant 0 : index
      %13 = vector.load %arg5[%c0_11, %c0_12] : memref<8x128xf32, #tpu.memory_space<vmem>>, vector<8x128xf32>
      tpu.vector_store %arg5[%c0_11, %c0_12], %12 {strides = array<i32>} : memref<8x128xf32, #tpu.memory_space<vmem>>, vector<8x128xf32>,
    } else {
    }
    %c0 = arith.constant 0 : index
    %c0_1 = arith.constant 0 : index
    %3 = vector.load %arg2[%c0, %c0_1] : memref<8x16xf32, #tpu.memory_space<vmem>>, vector<8x16xf32>
    %c0_2 = arith.constant 0 : index
    %c0_3 = arith.constant 0 : index
    %4 = vector.load %arg5[%c0_2, %c0_3] : memref<8x128xf32, #tpu.memory_space<vmem>>, vector<8x128xf32>
    %c0_4 = arith.constant 0 : index
    %c0_5 = arith.constant 0 : index
    %5 = vector.load %arg3[%c0_4, %c0_5] : memref<16x128xf32, #tpu.memory_space<vmem>>, vector<16x128xf32>
    %cst = arith.constant dense<0.000000e+00> : vector<8x128xf32>
    %6 = tpu.matmul %3, %5, %cst {dimension_numbers = #tpu.dot_dimension_numbers<[1], [0], [0], [1], [0, 0, 1, 1], [], []>} : vector<8x16xf32>, vector<16x128xf32>, vector<8x128xf32> -> vector<8x128xf32>
    %7 = arith.addf %4, %6 : vector<8x128xf32>
    %c0_6 = arith.constant 0 : index
    %c0_7 = arith.constant 0 : index
    %8 = vector.load %arg5[%c0_6, %c0_7] : memref<8x128xf32, #tpu.memory_space<vmem>>, vector<8x128xf32>
    tpu.vector_store %arg5[%c0_6, %c0_7], %7 {strides = array<i32>} : memref<8x128xf32, #tpu.memory_space<vmem>>, vector<8x128xf32>,
    %c0_i32_8 = arith.constant 0 : i32
    %9 = arith.cmpi eq, %arg1, %c0_i32_8 : i32
    %10 = arith.extui %9 : i1 to i32
    %c0_i32_9 = arith.constant 0 : i32
    %11 = arith.cmpi ne, %10, %c0_i32_9 : i32
    scf.if %11 {
      %c0_10 = arith.constant 0 : index
      %c0_11 = arith.constant 0 : index
      %12 = vector.load %arg5[%c0_10, %c0_11] : memref<8x128xf32, #tpu.memory_space<vmem>>, vector<8x5xf32>
      %c0_12 = arith.constant 0 : index
      %c0_13 = arith.constant 0 : index
      %13 = vector.load %arg4[%c0_12, %c0_13] : memref<8x5xf32, #tpu.memory_space<vmem>>, vector<8x5xf32>
      tpu.vector_store %arg4[%c0_12, %c0_13], %12 {strides = array<i32>} : memref<8x5xf32, #tpu.memory_space<vmem>>, vector<8x5xf32>,
    } else {
    }
    return
  }
  func.func @transform_0(%arg0: i32, %arg1: i32) -> (i32, i32) {
    %c0_i32 = arith.constant 0 : i32
    return %arg0, %arg1 : i32, i32
  }
  func.func @transform_1(%arg0: i32, %arg1: i32) -> (i32, i32) {
    %c0_i32 = arith.constant 0 : i32
    %c0_i32_0 = arith.constant 0 : i32
    return %arg1, %c0_i32 : i32, i32
  }
  func.func @transform_2(%arg0: i32, %arg1: i32) -> (i32, i32) {
    %c0_i32 = arith.constant 0 : i32
    %c0_i32_0 = arith.constant 0 : i32
    return %arg0, %c0_i32 : i32, i32
  }
}

</mosaic_0001>

<llo_original>
// kernel: tpu_custom_call.1
$region0: #{tpu_custom_call.1}
  #allocation0 [shape = 'u32[]', space=smem, size = 0x4, offset = 0x4, fixed_abs, tag = 'smem constant byte address 0x4 - core index']
  #allocation1 [shape = 'u32[144,128]{1,0:T(1,128)}', space=vmem, size = 0x12000, scoped, tag = 'internal scratch']
  #allocation2 [shape = 'f32[8,128]{1,0:T(8,128)}', space=vmem, size = 0x1000, scoped, tag = 'scratch operand']
  %s0 = inlined_call_operand.hbm [shape: f32[8,16], index: 0, kind: input, shape index: {}]
  %s1 = inlined_call_operand.hbm [shape: f32[16,128], index: 1, kind: input, shape index: {}]
  %s2 = inlined_call_operand.hbm [shape: f32[8,5], index: 2, kind: output, shape index: {}]
  %s3 = sld [smem:[#allocation0]]
  $region34: #{tpu_custom_call.1} parent=0
    _
  %s5 = ssub.s32 1, %s3
  %s6 = scalar_select 0, %s5, %s3
  $region1: #{tpu_custom_call.1} parent=0
    #allocation3 [shape = 'u8[4096]{0}', space=vmem, size = 0x1000, scoped, tag = 'input window, operand 0, single buffered']
    #allocation4 [shape = 's32[1]{0}', space=sflag, size = 0x4, scoped, tag = 'scoped memory for tpu_custom_call.1']
    #allocation5 [shape = 's32[1]{0}', space=sflag, size = 0x4, scoped, tag = 'scoped memory for tpu_custom_call.1']
    #allocation6 [shape = 'u8[8192]{0}', space=vmem, size = 0x2000, scoped, tag = 'input window, operand 1, single buffered']
    #allocation7 [shape = 's32[1]{0}', space=sflag, size = 0x4, scoped, tag = 'scoped memory for tpu_custom_call.1']
    #allocation8 [shape = 'u8[4096]{0}', space=vmem, size = 0x1000, scoped, tag = 'output window, operand 0, single buffered']
    %7 = vsyncpa [#allocation4], 0
    %8 = vsyncpa [#allocation7], 0
    %9 = vsyncpa [#allocation5], 0
    // Predicated region
    $region2: #{tpu_custom_call.1} parent=1 // pred_check
      _
    $region3: #{tpu_custom_call.1} parent=1 // pred_check_branch
      %11 = sbr.rel (0) target = $region5
    $region4: #{tpu_custom_call.1} parent=1 // pred_region
      %s13 = ssub.s32 128, 128
      %14 = vsyncadd [#allocation4], %s13
      %s16 = sshll.u32 [#allocation3], 4
      %s17 = int_to_ptr.vmem [resolvable:$true] %s16
      %19 = dma.hbm_to_vmem [thread:$0]  %s0, 128, %s17, [#allocation4]
    $region5: #{tpu_custom_call.1} parent=1 // pred_fallthru
      _
    // Predicated region
    $region6: #{tpu_custom_call.1} parent=1 // pred_check
      _
    $region7: #{tpu_custom_call.1} parent=1 // pred_check_branch
      %21 = sbr.rel (0) target = $region9
    $region8: #{tpu_custom_call.1} parent=1 // pred_region
      %s23 = ssub.s32 256, 256
      %24 = vsyncadd [#allocation7], %s23
      %s25 = sshll.u32 [#allocation6], 4
      %s26 = int_to_ptr.vmem [resolvable:$true] %s25
      %31 = dma.hbm_to_vmem [thread:$0]  %s1, 256, %s26, [#allocation7], 128, 128, 8
    $region9: #{tpu_custom_call.1} parent=1 // pred_fallthru
      _
    // Predicated region
    $region10: #{tpu_custom_call.1} parent=1 // pred_check
      _
    $region11: #{tpu_custom_call.1} parent=1 // pred_check_branch
      %33 = sbr.rel (0) target = $region13
    $region12: #{tpu_custom_call.1} parent=1 // pred_region
      %34 = dma.done [#allocation4], 128
    $region13: #{tpu_custom_call.1} parent=1 // pred_fallthru
      _
    // Predicated region
    $region14: #{tpu_custom_call.1} parent=1 // pred_check
      _
    $region15: #{tpu_custom_call.1} parent=1 // pred_check_branch
      %36 = sbr.rel (0) target = $region17
    $region16: #{tpu_custom_call.1} parent=1 // pred_region
      %37 = dma.done [#allocation7], 256
    $region17: #{tpu_custom_call.1} parent=1 // pred_fallthru
      _
    %p38 = scmp.eq.s32.totalorder 0, 0
    // Predicated region
    $region18: #{tpu_custom_call.1} parent=1 // pred_check
      %p39 = pneg %p38
    $region19: #{tpu_custom_call.1} parent=1 // pred_check_branch
      %41 = sbr.rel (%p39) target = $region21
    $region20: #{tpu_custom_call.1} parent=1 // pred_region
      %42 = vst [vmem:[#allocation2] sm:$0xff] 0.0
    $region21: #{tpu_custom_call.1} parent=1 // pred_fallthru
      _
    %v43 = vld [vmem:[#allocation3] sm:$0xff]
    %v44 = vld [vmem:[#allocation2] sm:$0xff]
    %v45 = vld [vmem:[#allocation6] sm:$0xff]
    %v46 = vld [vmem:[#allocation6 + $0x8] sm:$0xff]
    %vm47 = vcmask 130048
    %v49 = vsel %vm47, %v43, 0
    %51 = vmatprep.subr.mxu0 0.0
    %52 = vmatpush1.msra.mxu0 %v45
    %53 = vmatprep.subr.mxu0 0.0
    %54 = vmatpush1.msra.mxu0 %v46
    %55 = vmatprep.subr.mxu0 0.0
    %56 = vmatpush1.msra.mxu0 0.0
    %57 = vmatprep.subr.mxu0 0.0
    %58 = vmatpush1.msra.mxu0 0.0
    %59 = vmatprep.subr.mxu0 0.0
    %60 = vmatpush1.msra.mxu0 0.0
    %61 = vmatprep.subr.mxu0 0.0
    %62 = vmatpush1.msra.mxu0 0.0
    %63 = vmatprep.subr.mxu0 0.0
    %64 = vmatpush1.msra.mxu0 0.0
    %65 = vmatprep.subr.mxu0 0.0
    %66 = vmatpush1.msra.mxu0 0.0
    %67 = vmatprep.subr.mxu0 0.0
    %68 = vmatpush1.msra.mxu0 0.0
    %69 = vmatprep.subr.mxu0 0.0
    %70 = vmatpush1.msra.mxu0 0.0
    %71 = vmatprep.subr.mxu0 0.0
    %72 = vmatpush1.msra.mxu0 0.0
    %73 = vmatprep.subr.mxu0 0.0
    %74 = vmatpush1.msra.mxu0 0.0
    %75 = vmatprep.subr.mxu0 0.0
    %76 = vmatpush1.msra.mxu0 0.0
    %77 = vmatprep.subr.mxu0 0.0
    %78 = vmatpush1.msra.mxu0 0.0
    %79 = vmatprep.subr.mxu0 0.0
    %80 = vmatpush1.msra.mxu0 0.0
    %81 = vmatprep.subr.mxu0 0.0
    %82 = vmatpush1.msra.mxu0 0.0
    %83 = vmatprep.subr.mxu0 0.0
    %84 = vmatpush1.msra.mxu0 0.0
    %85 = vmatprep.subr.mxu0 0.0
    %86 = vmatpush1.msra.mxu0 0.0
    %87 = vmatprep.subr.mxu0 0.0
    %88 = vmatpush1.msra.mxu0 0.0
    %89 = vmatprep.subr.mxu0 0.0
    %90 = vmatpush1.msra.mxu0 0.0
    %91 = vmatprep.subr.mxu0 0.0
    %92 = vmatpush1.msra.mxu0 0.0
    %93 = vmatprep.subr.mxu0 0.0
    %94 = vmatpush1.msra.mxu0 0.0
    %95 = vmatprep.subr.mxu0 0.0
    %96 = vmatpush1.msra.mxu0 0.0
    %97 = vmatprep.subr.mxu0 0.0
    %98 = vmatpush1.msra.mxu0 0.0
    %99 = vmatprep.subr.mxu0 0.0
    %100 = vmatpush1.msra.mxu0 0.0
    %101 = vmatprep.subr.mxu0 0.0
    %102 = vmatpush1.msra.mxu0 0.0
    %103 = vmatprep.subr.mxu0 0.0
    %104 = vmatpush1.msra.mxu0 0.0
    %105 = vmatprep.subr.mxu0 0.0
    %106 = vmatpush1.msra.mxu0 0.0
    %107 = vmatprep.subr.mxu0 0.0
    %108 = vmatpush1.msra.mxu0 0.0
    %109 = vmatprep.subr.mxu0 0.0
    %110 = vmatpush1.msra.mxu0 0.0
    %111 = vmatprep.subr.mxu0 0.0
    %112 = vmatpush1.msra.mxu0 0.0
    %113 = vmatprep.subr.mxu0 0.0
    %114 = vmatpush1.msra.mxu0 0.0
    %115 = vmatprep.mubr.f32.mxu0 0.0
    %116 = vmatmul.mubr.f32.gmra.mrb[0].mxu0 %v49
    %v117 = vpop.f32.mrb[0].mxu0
    %v118 = vadd.f32 0.0, %v117
    %v119 = vpop.f32.mrb[0].mxu0
    %120 = vdwg.mxu0
    %v121 = vadd.f32 %v44, %v118
    %122 = vst [vmem:[#allocation2] sm:$0xff] %v121
    // Predicated region
    $region22: #{tpu_custom_call.1} parent=1 // pred_check
      %p123 = pneg %p38
    $region23: #{tpu_custom_call.1} parent=1 // pred_check_branch
      %125 = sbr.rel (%p123) target = $region25
    $region24: #{tpu_custom_call.1} parent=1 // pred_region
      %v126 = vld [vmem:[#allocation2] sm:$0xff]
      %vm127 = vcmask 39936
      %128 = vst.msk [vmem:[#allocation8] sm:$0xff] %vm127, %v126
    $region25: #{tpu_custom_call.1} parent=1 // pred_fallthru
      _
    // Predicated region
    $region26: #{tpu_custom_call.1} parent=1 // pred_check
      _
    $region27: #{tpu_custom_call.1} parent=1 // pred_check_branch
      %130 = sbr.rel (0) target = $region29
    $region28: #{tpu_custom_call.1} parent=1 // pred_region
      %s132 = ssub.s32 128, 128
      %133 = vsyncadd [#allocation5], %s132
      %s135 = sshll.u32 [#allocation8], 4
      %s136 = int_to_ptr.vmem [resolvable:$true] %s135
      %138 = dma.vmem_to_hbm [thread:$0]  %s136, 128, %s2, [#allocation5]
    $region29: #{tpu_custom_call.1} parent=1 // pred_fallthru
      _
    // Predicated region
    $region30: #{tpu_custom_call.1} parent=1 // pred_check
      _
    $region31: #{tpu_custom_call.1} parent=1 // pred_check_branch
      %140 = sbr.rel (0) target = $region33
    $region32: #{tpu_custom_call.1} parent=1 // pred_region
      %141 = dma.done [#allocation5], 128
    $region33: #{tpu_custom_call.1} parent=1 // pred_fallthru
      _
    %142 = vsyncpa [#allocation4], 1
    %143 = vsyncpa [#allocation7], 1
    %144 = vsyncpa [#allocation5], 1

</llo_original>
